<compile_context>
chip_gen: v5e
topology: v5e:2x2
jax: 0.10.0
libtpu: 0.0.40
codegen_flags: <defaults>
</compile_context>

<pallas_src>
import functools

import jax
import jax.numpy as jnp
from jax.experimental import pallas as pl
from jax.experimental.pallas import tpu as pltpu


def _round_up(x, m):
    return ((x + m - 1) // m) * m


def _hw_params():
    """Generation-aware VMEM budget / scoped limit / default row-tile target."""
    try:
        kind = jax.devices()[0].device_kind.lower()
    except Exception:
        kind = ""
    if "v7" in kind:
        # v7x: 64 MiB physical VMEM per TC, 32 MiB scoped default, 2 TCs/chip.
        return {"budget": 26 << 20, "limit": 32 << 20, "tile": 2048, "two_tc": True}
    if any(g in kind for g in ("v4", "v5", "v6")):
        # v4 / v5e / v6e: 128 MiB physical VMEM, single TensorCore per chip.
        return {"budget": 56 << 20, "limit": 80 << 20, "tile": 1024, "two_tc": False}
    # Unknown backend: stay conservative.
    return {"budget": 24 << 20, "limit": 32 << 20, "tile": 1024, "two_tc": False}


def _fau_head_kernel(x_ref, w1_ref, b1_ref, w2_ref, b2_ref, o_ref):
    """sigmoid(relu(x @ W1 + b1) @ W2 + b2) for one (tr, D) row tile."""
    # In-kernel cast of the activation tile to the compute dtype: the wrapper never
    # materialises a casted / padded copy of x in HBM (x is read exactly once).
    x = x_ref[...].astype(w1_ref.dtype)
    h = jnp.dot(x, w1_ref[...], preferred_element_type=jnp.float32)
    h = jnp.maximum(h + b1_ref[...], 0.0)          # b1 is (1, H) -> broadcasts over rows
    # Dropout is identity at inference time.
    # TODO(synk): training-mode dropout (pltpu.prng_random_bits mask) not emitted.
    logits = jnp.dot(h.astype(w2_ref.dtype), w2_ref[...],
                     preferred_element_type=jnp.float32)
    o_ref[...] = jax.nn.sigmoid(logits + b2_ref[...]).astype(o_ref.dtype)


@functools.partial(jax.jit, static_argnames=("tile_rows", "compute_dtype"))
def fau_detection_head(x, w1, b1, w2, b2, *, tile_rows=None, compute_dtype="auto"):
    """
    Args:
      x  : (B, T, D) input features.
      w1 : (D, H)  first Linear weight (transposed vs torch's (H, D)).
      b1 : (H,)    first Linear bias.
      w2 : (H, F)  second Linear weight (transposed vs torch's (F, H)).
      b2 : (F,)    second Linear bias.
      tile_rows     : target row tile (None -> generation-aware default; auto-shrunk
                      to fit the VMEM budget / problem size).
      compute_dtype : dtype for the MXU inputs. "auto" -> bf16 for large D/H f32
                      problems, else x.dtype.  Accumulation / bias / ReLU / sigmoid
                      are always f32.
    Returns:
      (B, T, F) FAU predictions in [0, 1], in x.dtype.
    """
    B, T, D = x.shape
    H = w1.shape[1]
    F = w2.shape[1]
    N = B * T

    hw = _hw_params()
    out_dtype = x.dtype
    x_dt = jnp.dtype(x.dtype)

    if compute_dtype == "auto":
        if x_dt == jnp.float32 and D >= 256 and H >= 128:
            cdt = jnp.dtype(jnp.bfloat16)
        else:
            cdt = x_dt
    elif compute_dtype is None:
        cdt = x_dt
    else:
        cdt = jnp.dtype(compute_dtype)

    x_item = x_dt.itemsize
    out_item = jnp.dtype(out_dtype).itemsize

    # Sublane packing of the VMEM input tile (x stays in its native dtype in HBM).
    row_align = max(8, 32 // x_item)

    # --- choose the effective row tile --------------------------------------------
    target = int(tile_rows) if tile_rows is not None else hw["tile"]
    tr = max(row_align, min(target, _round_up(N, row_align)))
    tr = _round_up(tr, row_align)
    if tr >= 256:
        tr = _round_up(tr, 256)        # MXU-friendly row count (partial block is masked)

    lane_f = max(F, 128)               # lanes pad to 128 in VMEM

    def _fits(t):
        x_tiles = 2 * t * D * x_item                               # double-buffered input
        x_cast = t * D * cdt.itemsize if cdt != x_dt else 0        # in-kernel cast copy
        h_f32 = t * H * 4                                          # relu(x@W1+b1), f32
        h_cast = t * H * cdt.itemsize if cdt != jnp.float32 else 0
        logits = t * lane_f * 4                                    # pre-sigmoid f32
        o_tiles = 2 * t * lane_f * out_item                        # double-buffered output
        wts = 2 * (D * H * cdt.itemsize + H * 4 + H * F * cdt.itemsize + F * 4)
        return x_tiles + x_cast + h_f32 + h_cast + logits + o_tiles + wts <= hw["budget"]

    while tr > row_align and not _fits(tr):
        tr = _round_up(max(row_align, tr // 2), row_align)

    if tr >= N:
        tr = N                         # single full-extent block (always legal)

    # Only v7x has 2 TensorCores worth splitting the parallel row grid over; on
    # v5e/v6e the grid is a serial loop, so extra steps are pure overhead.
    if hw["two_tc"]:
        while pl.cdiv(N, tr) < 2 and tr >= 2 * row_align:
            tr = _round_up(max(row_align, tr // 2), row_align)

    grid = (pl.cdiv(N, tr),)           # partial last block: reads padded, writes masked

    # --- prepare operands (no pad / no cast of x: single HBM pass over activations) -
    x2d = x.reshape(N, D)
    w1c = w1.astype(cdt)
    w2c = w2.astype(cdt)
    b1_2d = b1.astype(jnp.float32).reshape(1, H)   # added after f32 accumulation
    b2_2d = b2.astype(jnp.float32).reshape(1, F)

    cost = pl.CostEstimate(
        flops=2 * N * H * (D + F),
        transcendentals=N * F,                      # sigmoid exp
        bytes_accessed=(N * D * x_item + N * F * out_item
                        + (D * H + H * F) * cdt.itemsize + (H + F) * 4),
    )

    out2d = pl.pallas_call(
        _fau_head_kernel,
        out_shape=jax.ShapeDtypeStruct((N, F), out_dtype),
        grid_spec=pl.GridSpec(
            grid=grid,
            in_specs=[
                # row tile of activations (native dtype; cast happens in-kernel)
                pl.BlockSpec((tr, D), lambda i: (i, 0)),
                # weights / biases: full arrays, constant block -> resident across steps
                pl.BlockSpec((D, H), lambda i: (0, 0)),
                pl.BlockSpec((1, H), lambda i: (0, 0)),
                pl.BlockSpec((H, F), lambda i: (0, 0)),
                pl.BlockSpec((1, F), lambda i: (0, 0)),
            ],
            out_specs=pl.BlockSpec((tr, F), lambda i: (i, 0)),
        ),
        compiler_params=pltpu.CompilerParams(
            dimension_semantics=("parallel",),
            vmem_limit_bytes=hw["limit"],
        ),
        cost_estimate=cost,
    )(x2d, w1c, b1_2d, w2c, b2_2d)

    return out2d.reshape(B, T, F)


def init_params(key, input_dim, hidden_dim, num_faus, dtype=jnp.float32):
    """Deterministic synthetic parameters (torch.nn.Linear-like scaling)."""
    k1, k2, k3, k4 = jax.random.split(key, 4)
    lim1 = 1.0 / (input_dim ** 0.5)
    lim2 = 1.0 / (hidden_dim ** 0.5)
    w1 = jax.random.uniform(k1, (input_dim, hidden_dim), dtype, -lim1, lim1)
    b1 = jax.random.uniform(k2, (hidden_dim,), dtype, -lim1, lim1)
    w2 = jax.random.uniform(k3, (hidden_dim, num_faus), dtype, -lim2, lim2)
    b2 = jax.random.uniform(k4, (num_faus,), dtype, -lim2, lim2)
    return w1, b1, w2, b2


def _reference(x, w1, b1, w2, b2):
    hi = jax.lax.Precision.HIGHEST
    h = jnp.maximum(jnp.dot(x, w1, precision=hi) + b1, 0.0)
    return jax.nn.sigmoid(jnp.dot(h, w2, precision=hi) + b2)


if __name__ == "__main__":
    key = jax.random.PRNGKey(0)
    kx, kp, kx2, kp2 = jax.random.split(key, 4)

    # 1) Small shapes (B, T, D) -> (B, T, F); 'auto' keeps f32 compute at D=32.
    B, T, D, H, F = 2, 8, 32, 32, 12
    x = jax.random.normal(kx, (B, T, D), dtype=jnp.float32)
    w1, b1, w2, b2 = init_params(kp, D, H, F)
    out = jax.block_until_ready(fau_detection_head(x, w1, b1, w2, b2))
    ref = _reference(x, w1, b1, w2, b2)
    assert out.shape == (B, T, F)
    assert jnp.allclose(out, ref, atol=1e-5), "small f32 mismatch vs reference"

    # 2) Row count not a multiple of the tile / alignment (partial-block path, no pad).
    x_odd = jax.random.normal(kx, (3, 5, D), dtype=jnp.float32)
    out_odd = jax.block_until_ready(fau_detection_head(x_odd, w1, b1, w2, b2))
    ref_odd = _reference(x_odd, w1, b1, w2, b2)
    assert out_odd.shape == (3, 5, F)
    assert jnp.allclose(out_odd, ref_odd, atol=1e-5), "partial-block mismatch vs reference"

    # 3) Module-default dims (768 -> 512 -> 12): 'auto' picks bf16 MXU inputs.
    B2, T2, D2, H2, F2 = 2, 16, 768, 512, 12
    x_big = jax.random.normal(kx2, (B2, T2, D2), dtype=jnp.float32)
    w1b, b1b, w2b, b2b = init_params(kp2, D2, H2, F2)
    ref_big = _reference(x_big, w1b, b1b, w2b, b2b)
    out_big = jax.block_until_ready(fau_detection_head(x_big, w1b, b1b, w2b, b2b))
    assert out_big.shape == (B2, T2, F2)
    assert jnp.allclose(out_big, ref_big, atol=2e-2), "bf16-auto mismatch vs reference"

    # 4) Explicit f32 compute path on the realistic shapes.
    out_big_f32 = jax.block_until_ready(
        fau_detection_head(x_big, w1b, b1b, w2b, b2b, compute_dtype=jnp.float32))
    assert jnp.allclose(out_big_f32, ref_big, atol=5e-4), "explicit f32 mismatch vs reference"

    print("KERNEL_OK")
</pallas_src>

<mosaic_0001>
module attributes {stable_mosaic.version = 11 : i64} {
  func.func @_fau_head_kernel(%arg0: i32, %arg1: memref<16x32xf32, #tpu.memory_space<vmem>>, %arg2: memref<32x32xf32, #tpu.memory_space<vmem>>, %arg3: memref<1x32xf32, #tpu.memory_space<vmem>>, %arg4: memref<32x12xf32, #tpu.memory_space<vmem>>, %arg5: memref<1x12xf32, #tpu.memory_space<vmem>>, %arg6: memref<16x12xf32, #tpu.memory_space<vmem>>) attributes {dimension_semantics = [#tpu.dimension_semantics<parallel>], iteration_bounds = array<i64: 1>, scalar_prefetch = 0 : i64, scratch_operands = 0 : i64, tpu.core_type = #tpu.core_type<tc>, window_params = [{transform_indices = @transform_0, window_bounds = array<i64: 16, 32>}, {pipeline_mode = #tpu.pipeline_mode<synchronous>, transform_indices = @transform_1, window_bounds = array<i64: 32, 32>}, {pipeline_mode = #tpu.pipeline_mode<synchronous>, transform_indices = @transform_2, window_bounds = array<i64: 1, 32>}, {pipeline_mode = #tpu.pipeline_mode<synchronous>, transform_indices = @transform_3, window_bounds = array<i64: 32, 12>}, {pipeline_mode = #tpu.pipeline_mode<synchronous>, transform_indices = @transform_4, window_bounds = array<i64: 1, 12>}, {transform_indices = @transform_5, window_bounds = array<i64: 16, 12>}]} {
    %c0 = arith.constant 0 : index
    %c0_0 = arith.constant 0 : index
    %0 = vector.load %arg1[%c0, %c0_0] : memref<16x32xf32, #tpu.memory_space<vmem>>, vector<16x32xf32>
    %c0_1 = arith.constant 0 : index
    %c0_2 = arith.constant 0 : index
    %1 = vector.load %arg2[%c0_1, %c0_2] : memref<32x32xf32, #tpu.memory_space<vmem>>, vector<32x32xf32>
    %cst = arith.constant dense<0.000000e+00> : vector<16x32xf32>
    %2 = tpu.matmul %0, %1, %cst {dimension_numbers = #tpu.dot_dimension_numbers<[1], [0], [0], [1], [0, 0, 1, 1], [], []>} : vector<16x32xf32>, vector<32x32xf32>, vector<16x32xf32> -> vector<16x32xf32>
    %c0_3 = arith.constant 0 : index
    %c0_4 = arith.constant 0 : index
    %3 = vector.load %arg3[%c0_3, %c0_4] : memref<1x32xf32, #tpu.memory_space<vmem>>, vector<1x32xf32>
    %4 = vector.broadcast %3 : vector<1x32xf32> to vector<16x32xf32>
    %5 = arith.addf %2, %4 : vector<16x32xf32>
    %cst_5 = arith.constant 0.000000e+00 : f32
    %6 = vector.broadcast %cst_5 : f32 to vector<16x32xf32>
    %7 = arith.maximumf %5, %6 : vector<16x32xf32>
    %c0_6 = arith.constant 0 : index
    %c0_7 = arith.constant 0 : index
    %8 = vector.load %arg4[%c0_6, %c0_7] : memref<32x12xf32, #tpu.memory_space<vmem>>, vector<32x12xf32>
    %cst_8 = arith.constant dense<0.000000e+00> : vector<16x12xf32>
    %9 = tpu.matmul %7, %8, %cst_8 {dimension_numbers = #tpu.dot_dimension_numbers<[1], [0], [0], [1], [0, 0, 1, 1], [], []>} : vector<16x32xf32>, vector<32x12xf32>, vector<16x12xf32> -> vector<16x12xf32>
    %c0_9 = arith.constant 0 : index
    %c0_10 = arith.constant 0 : index
    %10 = vector.load %arg5[%c0_9, %c0_10] : memref<1x12xf32, #tpu.memory_space<vmem>>, vector<1x12xf32>
    %11 = vector.broadcast %10 : vector<1x12xf32> to vector<16x12xf32>
    %12 = arith.addf %9, %11 : vector<16x12xf32>
    %13 = arith.negf %12 : vector<16x12xf32>
    %14 = math.exp %13 : vector<16x12xf32>
    %cst_11 = arith.constant 1.000000e+00 : f32
    %15 = vector.broadcast %cst_11 : f32 to vector<16x12xf32>
    %16 = arith.addf %15, %14 : vector<16x12xf32>
    %17 = arith.divf %15, %16 : vector<16x12xf32>
    %c0_12 = arith.constant 0 : index
    %c0_13 = arith.constant 0 : index
    %18 = vector.load %arg6[%c0_12, %c0_13] : memref<16x12xf32, #tpu.memory_space<vmem>>, vector<16x12xf32>
    tpu.vector_store %arg6[%c0_12, %c0_13], %17 {strides = array<i32>} : memref<16x12xf32, #tpu.memory_space<vmem>>, vector<16x12xf32>,
    return
  }
  func.func @transform_0(%arg0: i32) -> (i32, i32) {
    %c0_i32 = arith.constant 0 : i32
    %c0_i32_0 = arith.constant 0 : i32
    return %arg0, %c0_i32 : i32, i32
  }
  func.func @transform_1(%arg0: i32) -> (i32, i32) {
    %c0_i32 = arith.constant 0 : i32
    %c0_i32_0 = arith.constant 0 : i32
    %c0_i32_1 = arith.constant 0 : i32
    return %c0_i32, %c0_i32_0 : i32, i32
  }
  func.func @transform_2(%arg0: i32) -> (i32, i32) {
    %c0_i32 = arith.constant 0 : i32
    %c0_i32_0 = arith.constant 0 : i32
    %c0_i32_1 = arith.constant 0 : i32
    return %c0_i32, %c0_i32_0 : i32, i32
  }
  func.func @transform_3(%arg0: i32) -> (i32, i32) {
    %c0_i32 = arith.constant 0 : i32
    %c0_i32_0 = arith.constant 0 : i32
    %c0_i32_1 = arith.constant 0 : i32
    return %c0_i32, %c0_i32_0 : i32, i32
  }
  func.func @transform_4(%arg0: i32) -> (i32, i32) {
    %c0_i32 = arith.constant 0 : i32
    %c0_i32_0 = arith.constant 0 : i32
    %c0_i32_1 = arith.constant 0 : i32
    return %c0_i32, %c0_i32_0 : i32, i32
  }
  func.func @transform_5(%arg0: i32) -> (i32, i32) {
    %c0_i32 = arith.constant 0 : i32
    %c0_i32_0 = arith.constant 0 : i32
    return %arg0, %c0_i32 : i32, i32
  }
}

</mosaic_0001>

<llo_original>
// kernel: fau_detection_head.1
$region0: #{fau_detection_head.1}
  #allocation0 [shape = 'u32[]', space=smem, size = 0x4, offset = 0x4, fixed_abs, tag = 'smem constant byte address 0x4 - core index']
  #allocation1 [shape = 'u32[72,128]{1,0:T(1,128)}', space=vmem, size = 0x9000, scoped, tag = 'internal scratch']
  %s0 = inlined_call_operand.vmem [shape: f32[16,32], index: 0, kind: input, shape index: {}]
  %s1 = inlined_call_operand.vmem [shape: f32[32,32], index: 1, kind: input, shape index: {}]
  %s2 = inlined_call_operand.vmem [shape: f32[1,32], index: 2, kind: input, shape index: {}]
  %s3 = inlined_call_operand.vmem [shape: f32[32,12], index: 3, kind: input, shape index: {}]
  %s4 = inlined_call_operand.vmem [shape: f32[1,12], index: 4, kind: input, shape index: {}]
  %s5 = inlined_call_operand.hbm [shape: f32[16,12], index: 5, kind: output, shape index: {}]
  %s6 = sld [smem:[#allocation0]]
  $region30: #{fau_detection_head.1} parent=0
    _
  %s8 = ssub.s32 1, %s6
  %s9 = scalar_select 0, %s8, %s6
  $region1: #{fau_detection_head.1} parent=0
    #allocation2 [shape = 'u8[8192]{0}', space=vmem, size = 0x2000, scoped, tag = 'output window, operand 0, single buffered']
    #allocation3 [shape = 's32[1]{0}', space=sflag, size = 0x4, scoped, tag = 'scoped memory for fau_detection_head.1']
    %10 = vsyncpa [#allocation3], 0
    // Predicated region
    $region2: #{fau_detection_head.1} parent=1 // pred_check
      _
    $region3: #{fau_detection_head.1} parent=1 // pred_check_branch
      %12 = sbr.rel (0) target = $region5
    $region4: #{fau_detection_head.1} parent=1 // pred_region
      _
    $region5: #{fau_detection_head.1} parent=1 // pred_fallthru
      _
    // Predicated region
    $region6: #{fau_detection_head.1} parent=1 // pred_check
      _
    $region7: #{fau_detection_head.1} parent=1 // pred_check_branch
      %14 = sbr.rel (0) target = $region9
    $region8: #{fau_detection_head.1} parent=1 // pred_region
      _
    $region9: #{fau_detection_head.1} parent=1 // pred_fallthru
      _
    // Predicated region
    $region10: #{fau_detection_head.1} parent=1 // pred_check
      _
    $region11: #{fau_detection_head.1} parent=1 // pred_check_branch
      %16 = sbr.rel (0) target = $region13
    $region12: #{fau_detection_head.1} parent=1 // pred_region
      _
    $region13: #{fau_detection_head.1} parent=1 // pred_fallthru
      _
    // Predicated region
    $region14: #{fau_detection_head.1} parent=1 // pred_check
      _
    $region15: #{fau_detection_head.1} parent=1 // pred_check_branch
      %18 = sbr.rel (0) target = $region17
    $region16: #{fau_detection_head.1} parent=1 // pred_region
      _
    $region17: #{fau_detection_head.1} parent=1 // pred_fallthru
      _
    // Predicated region
    $region18: #{fau_detection_head.1} parent=1 // pred_check
      _
    $region19: #{fau_detection_head.1} parent=1 // pred_check_branch
      %20 = sbr.rel (0) target = $region21
    $region20: #{fau_detection_head.1} parent=1 // pred_region
      _
    $region21: #{fau_detection_head.1} parent=1 // pred_fallthru
      _
    %v21 = vld [vmem:[%s0] sm:$0xff]
    %v22 = vld [vmem:[%s0 + $0x8] sm:$0xff]
    %v23 = vld [vmem:[%s1] sm:$0xff]
    %v24 = vld [vmem:[%s1 + $0x8] sm:$0xff]
    %v25 = vld [vmem:[%s1 + $0x10] sm:$0xff]
    %v26 = vld [vmem:[%s1 + $0x18] sm:$0xff]
    %v27 = vld [vmem:[%s2] sm:$0x1]
    %v29 = vperm.slane %v27, 0
    %vm31 = vcmask 261120
    %v33 = vsel %vm31, %v21, 0
    %v36 = vsel %vm31, %v22, 0
    %38 = vmatpush.msra.mxu0 0.0
    %39 = vmatpush.msra.mxu0 0.0
    %40 = vmatpush.msra.mxu0 0.0
    %41 = vmatpush.msra.mxu0 0.0
    %42 = vmatpush.msra.mxu0 0.0
    %43 = vmatpush.msra.mxu0 0.0
    %44 = vmatpush.msra.mxu0 0.0
    %45 = vmatpush.msra.mxu0 0.0
    %46 = vmatpush.msra.mxu0 0.0
    %47 = vmatpush.msra.mxu0 0.0
    %48 = vmatpush.msra.mxu0 0.0
    %49 = vmatpush.msra.mxu0 0.0
    %50 = vmatpush.msra.mxu0 %v26
    %51 = vmatpush.msra.mxu0 %v25
    %52 = vmatpush.msra.mxu0 %v24
    %53 = vmatpush.msra.mxu0 %v23
    %54 = vmatmul.f32.gmra.mxu0 %v33
    %v55 = vpop.f32.mrf.mxu0
    %v56 = vadd.f32 %v29, %v55
    %57 = vmatmul.f32.gmra.mxu0 %v36
    %v58 = vpop.f32.mrf.mxu0
    %v59 = vadd.f32 %v29, %v58
    %60 = vdwg.mxu0
    %v61 = vmax.f32 %v56, 0.0
    %v62 = vmax.f32 %v59, 0.0
    %v63 = vld [vmem:[%s3] sm:$0xff]
    %v64 = vld [vmem:[%s3 + $0x8] sm:$0xff]
    %v65 = vld [vmem:[%s3 + $0x10] sm:$0xff]
    %v66 = vld [vmem:[%s3 + $0x18] sm:$0xff]
    %v67 = vld [vmem:[%s4] sm:$0x1]
    %v69 = vperm.slane %v67, 0
    %v72 = vsel %vm31, %v61, 0
    %v75 = vsel %vm31, %v62, 0
    %77 = vmatpush.msra.mxu0 0.0
    %78 = vmatpush.msra.mxu0 0.0
    %79 = vmatpush.msra.mxu0 0.0
    %80 = vmatpush.msra.mxu0 0.0
    %81 = vmatpush.msra.mxu0 0.0
    %82 = vmatpush.msra.mxu0 0.0
    %83 = vmatpush.msra.mxu0 0.0
    %84 = vmatpush.msra.mxu0 0.0
    %85 = vmatpush.msra.mxu0 0.0
    %86 = vmatpush.msra.mxu0 0.0
    %87 = vmatpush.msra.mxu0 0.0
    %88 = vmatpush.msra.mxu0 0.0
    %89 = vmatpush.msra.mxu0 %v66
    %90 = vmatpush.msra.mxu0 %v65
    %91 = vmatpush.msra.mxu0 %v64
    %92 = vmatpush.msra.mxu0 %v63
    %93 = vmatmul.f32.gmra.mxu0 %v72
    %v94 = vpop.f32.mrf.mxu0
    %v95 = vadd.f32 %v69, %v94
    %96 = vmatmul.f32.gmra.mxu0 %v75
    %v97 = vpop.f32.mrf.mxu0
    %v98 = vadd.f32 %v69, %v97
    %99 = vdwg.mxu0
    %v100 = vxor.u32 %v95, 2147483648
    %v101 = vxor.u32 %v98, 2147483648
    %v102 = vmul.f32 %v100, 1.442695
    %v103 = vpow.pop %v102
    %v104 = vmul.f32 %v101, 1.442695
    %v105 = vpow.pop %v104
    %v106 = vadd.f32 %v103, 1.0
    %v107 = vadd.f32 %v105, 1.0
    %v108 = vrcp.pop %v106
    %v109 = vmul.f32 %v106, %v108
    %v110 = vsub.f32 1.0, %v109
    %v111 = vmul.f32 %v108, %v110
    %v112 = vadd.f32 %v108, %v111
    %vm113 = vweird.f32 %v106
    %vm114 = vweird.f32 %v108
    %vm115 = vmor %vm113, %vm114
    %v116 = vsel %vm115, %v108, %v112
    %v117 = vand.u32 2147483647, %v106
    %vm118 = vcmp.eq.f32.partialorder %v117, 8.507059e+37
    %v119 = vand.u32 %v106, 2147483648
    %v120 = vor.u32 1.1754944e-38, %v119
    %v121 = vsel %vm118, %v120, %v116
    %v122 = vmul.f32 1.0, %v121
    %v123 = vrcp.pop %v107
    %v124 = vmul.f32 %v107, %v123
    %v125 = vsub.f32 1.0, %v124
    %v126 = vmul.f32 %v123, %v125
    %v127 = vadd.f32 %v123, %v126
    %vm128 = vweird.f32 %v107
    %vm129 = vweird.f32 %v123
    %vm130 = vmor %vm128, %vm129
    %v131 = vsel %vm130, %v123, %v127
    %v132 = vand.u32 2147483647, %v107
    %vm133 = vcmp.eq.f32.partialorder %v132, 8.507059e+37
    %v134 = vand.u32 %v107, 2147483648
    %v135 = vor.u32 1.1754944e-38, %v134
    %v136 = vsel %vm133, %v135, %v131
    %v137 = vmul.f32 1.0, %v136
    %vm138 = vcmask 97280
    %139 = vst.msk [vmem:[#allocation2] sm:$0xff] %vm138, %v122
    %140 = vst.msk [vmem:[#allocation2 + $0x8] sm:$0xff] %vm138, %v137
    // Predicated region
    $region22: #{fau_detection_head.1} parent=1 // pred_check
      _
    $region23: #{fau_detection_head.1} parent=1 // pred_check_branch
      %142 = sbr.rel (0) target = $region25
    $region24: #{fau_detection_head.1} parent=1 // pred_region
      %144 = vsyncadd [#allocation3], 0
      %s145 = sshll.u32 [#allocation2], 4
      %s146 = int_to_ptr.vmem [resolvable:$true] %s145
      %s147 = sshll.u32 %s5, 4
      %s148 = int_to_ptr.hbm [resolvable:$true] %s147
      %153 = dma.vmem_to_hbm [thread:$0]  %s146, 256, %s148, [#allocation3], 128, 128, 8
    $region25: #{fau_detection_head.1} parent=1 // pred_fallthru
      _
    // Predicated region
    $region26: #{fau_detection_head.1} parent=1 // pred_check
      _
    $region27: #{fau_detection_head.1} parent=1 // pred_check_branch
      %155 = sbr.rel (0) target = $region29
    $region28: #{fau_detection_head.1} parent=1 // pred_region
      %157 = dma.done [#allocation3], 256
    $region29: #{fau_detection_head.1} parent=1 // pred_fallthru
      _
    %158 = vsyncpa [#allocation3], 1

</llo_original>
